<compile_context>
chip_gen: v6e
topology: v6e:2x2x1
jax: 0.10.0
libtpu: 0.0.40
codegen_flags: <defaults>
</compile_context>

<pallas_src>
import functools

import jax
import jax.numpy as jnp
from jax.experimental import pallas as pl
from jax.experimental.pallas import tpu as pltpu


# ----------------------------------------------------------------------------
# Pass 1: per-channel sum / sum-of-squares, accumulated over HW tiles.
# ----------------------------------------------------------------------------
def _stats_kernel(x_ref, sum_ref, sumsq_ref):
    # x_ref: (1, cb, hw_t); sum_ref / sumsq_ref: (1, cb, 1).  The output block
    # index is constant across the innermost ("arbitrary") hw-tile axis, so it
    # stays resident in VMEM -> accumulator pattern.
    t = pl.program_id(2)

    @pl.when(t == 0)
    def _():
        sum_ref[...] = jnp.zeros_like(sum_ref)
        sumsq_ref[...] = jnp.zeros_like(sumsq_ref)

    xf = x_ref[0].astype(jnp.float32)                            # (cb, hw_t)
    sum_ref[...] += jnp.sum(xf, axis=-1, keepdims=True)[None]
    sumsq_ref[...] += jnp.sum(xf * xf, axis=-1, keepdims=True)[None]


# ----------------------------------------------------------------------------
# Pass 2: apply folded GroupNorm scale/shift + fused gamma/beta conditioning.
# ----------------------------------------------------------------------------
def _apply_kernel(x_ref, emb_ref, scale_ref, shift_ref, wf_ref, bf_ref, o_ref,
                  *, mxu_dtype, apply_dtype):
    cb = x_ref.shape[1]

    # GroupNorm (+ optional affine) folded into one per-channel scale/shift.
    # The tiny (cb, 1) operands stay f32; the big temporary is kept in
    # apply_dtype (bf16 when activations are bf16 -> halves VMEM/vreg traffic).
    xn = (x_ref[0].astype(jnp.float32) * scale_ref[0]
          + shift_ref[0]).astype(apply_dtype)

    # Fused gamma/beta Linears: one (2*cb, E) @ (E, hw_t) MXU matmul.  Both
    # operands are fed at mxu_dtype (bf16 for bf16 activations), accumulation
    # stays f32 via preferred_element_type.
    emb = emb_ref[0].astype(mxu_dtype)
    gb = (jnp.dot(wf_ref[...], emb, preferred_element_type=jnp.float32)
          + bf_ref[...]).astype(apply_dtype)
    gamma1 = gb[:cb]          # = gamma + 1  ("+1" folded into the bias)
    beta = gb[cb:]

    o_ref[0] = (xn * gamma1 + beta).astype(o_ref.dtype)


# ----------------------------------------------------------------------------
# Tiling / budgeting helpers.
# ----------------------------------------------------------------------------
def _round_up(v, m):
    return (v + m - 1) // m * m


def _vmem_budget_bytes():
    """Generation-aware VMEM budget with headroom for compiler scratch."""
    cap = 128 << 20
    try:
        info = pltpu.get_tpu_info()
        cap = int(getattr(info, "vmem_capacity_bytes", cap))
    except Exception:
        pass
    # ~25% headroom: ~48 MiB on v7x (64 MiB physical), ~96 MiB on v5e/v6e.
    return max((cap * 3) // 4, 16 << 20)


def _cb_candidates(c, cg, align):
    out = []
    k = 1
    while k * cg <= c:
        cb = k * cg
        if c % cb == 0 and (cb % align == 0 or cb == c):
            out.append(cb)
        k += 1
    return out or [c]


def _apply_footprint_bytes(cb, hw_t, e, x_bytes, out_bytes, emb_bytes, w_bytes):
    f32 = 4
    io = 2 * hw_t * (cb * x_bytes + cb * out_bytes + e * emb_bytes)  # double-buffered
    weights = 2 * (2 * cb * e * w_bytes + 4 * cb * f32)
    temps = hw_t * (5 * cb + e) * f32
    return io + weights + temps + (2 << 20)


def _pick_tiling(c, cg, hw, e, x_dtype, emb_dtype, mxu_dtype, budget,
                 channels_per_block=None, spatial_block=None):
    x_bytes = jnp.dtype(x_dtype).itemsize
    emb_bytes = jnp.dtype(emb_dtype).itemsize
    w_bytes = jnp.dtype(mxu_dtype).itemsize
    align = {4: 8, 2: 16, 1: 32}.get(x_bytes, 8)

    cands = _cb_candidates(c, cg, align)
    if channels_per_block is not None:
        cb_pref = int(channels_per_block)
        if (cb_pref % cg != 0 or c % cb_pref != 0
                or (cb_pref % align != 0 and cb_pref != c)):
            raise ValueError(
                f"channels_per_block={cb_pref} must be a multiple of the group "
                f"size {cg}, divide C={c}, and be sublane-aligned ({align})")
        cb_order = [cb_pref]
    else:
        under = [v for v in cands if v <= 256]
        cb_pref = max(under) if under else min(cands)
        cb_order = [cb_pref] + sorted([v for v in cands if v < cb_pref],
                                      reverse=True)

    hw_ceil = _round_up(max(hw, 1), 128)
    if spatial_block is not None:
        t = int(spatial_block)
        if t % 128 != 0:
            raise ValueError("spatial_block must be a multiple of 128")
        tile_cands = [t]
    else:
        tiles = {t for t in (4096, 2048, 1024, 512, 256, 128) if t <= hw_ceil}
        if hw_ceil <= 4096:
            tiles.add(hw_ceil)
        tile_cands = sorted(tiles, reverse=True)

    for cb in cb_order:
        feas = [t for t in tile_cands
                if _apply_footprint_bytes(cb, t, e, x_bytes, x_bytes,
                                          emb_bytes, w_bytes) <= budget]
        if feas:
            # prefer minimal spatial padding, then the largest (lane-dense) tile
            t = min(feas, key=lambda v: (_round_up(hw, v) - hw, -v))
            return cb, t
    return cb_order[-1], min(tile_cands)


# ----------------------------------------------------------------------------
# Wrapper.
# ----------------------------------------------------------------------------
def adaptive_group_norm_spatial(x, emb, params, *, num_groups, eps=1e-5,
                                channels_per_block=None, spatial_block=None):
    """x: [N, C, H, W] (NCHW), emb: [N, E, H, W].  Returns [N, C, H, W]."""
    n, c, h, w = x.shape
    e = emb.shape[1]
    hw = h * w

    if c % num_groups != 0:
        raise ValueError(f"num_channels={c} must be divisible by num_groups={num_groups}")
    cg = c // num_groups

    # dtype policy: bf16 MXU / bf16 apply temporaries only when the activations
    # are already bf16 (keeps f32 inputs bit-accurate; stats always f32).
    # TODO(synk): on v5e (no bf16 VALU) keeping apply temporaries in f32 would
    # avoid extra converts; not special-cased here.
    mxu_dtype = (jnp.bfloat16
                 if (x.dtype == jnp.bfloat16 and emb.dtype == jnp.bfloat16)
                 else jnp.float32)
    apply_dtype = jnp.bfloat16 if x.dtype == jnp.bfloat16 else jnp.float32

    budget = _vmem_budget_bytes()
    cb, hw_t = _pick_tiling(c, cg, hw, e, x.dtype, emb.dtype, mxu_dtype, budget,
                            channels_per_block, spatial_block)
    nblk = c // cb
    hw_pad = _round_up(hw, hw_t)
    n_hw = hw_pad // hw_t

    x3 = x.reshape(n, c, hw)
    emb3 = emb.reshape(n, e, hw)
    if hw_pad != hw:
        # zero padding is stats-neutral (contributes 0 to sum / sumsq); the
        # padded output columns are sliced off below.
        pad = ((0, 0), (0, 0), (0, hw_pad - hw))
        x3 = jnp.pad(x3, pad)
        emb3 = jnp.pad(emb3, pad)

    # --------------------------- Pass 1: stats ---------------------------
    sums, sumsqs = pl.pallas_call(
        _stats_kernel,
        out_shape=(jax.ShapeDtypeStruct((n, c, 1), jnp.float32),
                   jax.ShapeDtypeStruct((n, c, 1), jnp.float32)),
        grid_spec=pltpu.PrefetchScalarGridSpec(
            num_scalar_prefetch=0,
            grid=(n, nblk, n_hw),
            in_specs=[pl.BlockSpec((1, cb, hw_t), lambda i, g, t: (i, g, t))],
            out_specs=(pl.BlockSpec((1, cb, 1), lambda i, g, t: (i, g, 0)),
                       pl.BlockSpec((1, cb, 1), lambda i, g, t: (i, g, 0))),
        ),
        compiler_params=pltpu.CompilerParams(
            dimension_semantics=("parallel", "parallel", "arbitrary"),
            vmem_limit_bytes=budget,
        ),
    )(x3)

    # ---------------- tiny glue: group stats -> scale/shift ----------------
    gn_w = params.get("gn_weight")
    gn_b = params.get("gn_bias")
    gn_w = jnp.ones((c,), jnp.float32) if gn_w is None else gn_w.astype(jnp.float32)
    gn_b = jnp.zeros((c,), jnp.float32) if gn_b is None else gn_b.astype(jnp.float32)

    inv_count = 1.0 / float(cg * hw)            # true (unpadded) count per group
    gsum = sums.reshape(n, num_groups, cg).sum(axis=-1)
    gsumsq = sumsqs.reshape(n, num_groups, cg).sum(axis=-1)
    mean_g = gsum * inv_count
    # TODO(synk): one-pass variance can cancel when |mean| >> std; switch to a
    # mean-subtracted second stats sweep if this feeds a long decoder chain.
    var_g = jnp.maximum(gsumsq * inv_count - mean_g * mean_g, 0.0)
    rstd_g = jax.lax.rsqrt(var_g + eps)
    mean_c = jnp.repeat(mean_g, cg, axis=-1)                      # (n, c)
    rstd_c = jnp.repeat(rstd_g, cg, axis=-1)
    scale_c = rstd_c * gn_w[None, :]
    shift_c = gn_b[None, :] - mean_c * scale_c
    scale3 = scale_c.reshape(n, c, 1).astype(jnp.float32)
    shift3 = shift_c.reshape(n, c, 1).astype(jnp.float32)

    # Fused conditioning weights, block-contiguous so each grid step reads one
    # (2*cb, E) slab: [gamma rows of block ; beta rows of block].
    wg = params["gamma_w"]                                        # (C, E)
    wb = params["beta_w"]
    bg = params["gamma_b"].astype(jnp.float32) + 1.0              # fold the "+1"
    bb = params["beta_b"].astype(jnp.float32)
    w_fused = jnp.concatenate(
        [wg.reshape(nblk, cb, e), wb.reshape(nblk, cb, e)], axis=1
    ).reshape(2 * c, e).astype(mxu_dtype)
    b_fused = jnp.concatenate(
        [bg.reshape(nblk, cb, 1), bb.reshape(nblk, cb, 1)], axis=1
    ).reshape(2 * c, 1)

    # --------------------------- Pass 2: apply ---------------------------
    kernel = functools.partial(_apply_kernel, mxu_dtype=mxu_dtype,
                               apply_dtype=apply_dtype)
    out = pl.pallas_call(
        kernel,
        out_shape=jax.ShapeDtypeStruct((n, c, hw_pad), x.dtype),
        grid_spec=pltpu.PrefetchScalarGridSpec(
            num_scalar_prefetch=0,
            grid=(n, nblk, n_hw),
            in_specs=[
                pl.BlockSpec((1, cb, hw_t), lambda i, g, t: (i, g, t)),   # x
                pl.BlockSpec((1, e, hw_t), lambda i, g, t: (i, 0, t)),    # emb tile
                pl.BlockSpec((1, cb, 1), lambda i, g, t: (i, g, 0)),      # scale
                pl.BlockSpec((1, cb, 1), lambda i, g, t: (i, g, 0)),      # shift
                pl.BlockSpec((2 * cb, e), lambda i, g, t: (g, 0)),        # fused W
                pl.BlockSpec((2 * cb, 1), lambda i, g, t: (g, 0)),        # fused b
            ],
            out_specs=pl.BlockSpec((1, cb, hw_t), lambda i, g, t: (i, g, t)),
        ),
        compiler_params=pltpu.CompilerParams(
            dimension_semantics=("parallel", "parallel", "parallel"),
            vmem_limit_bytes=budget,
        ),
    )(x3, emb3, scale3, shift3, w_fused, b_fused)

    if hw_pad != hw:
        out = out[:, :, :hw]
    return out.reshape(n, c, h, w)


# ----------------------------------------------------------------------------
# Plain-JAX reference (mirrors the PyTorch module, 4D / NCHW path).
# ----------------------------------------------------------------------------
def reference_forward(x, emb, params, *, num_groups, eps=1e-5):
    n, c, h, w = x.shape
    cg = c // num_groups
    xg = x.reshape(n, num_groups, cg, h, w)
    mean = xg.mean(axis=(2, 3, 4), keepdims=True)
    var = ((xg - mean) ** 2).mean(axis=(2, 3, 4), keepdims=True)
    xn = ((xg - mean) / jnp.sqrt(var + eps)).reshape(n, c, h, w)
    if "gn_weight" in params:
        xn = xn * params["gn_weight"][None, :, None, None] + params["gn_bias"][None, :, None, None]

    emb_t = jnp.transpose(emb, (0, 2, 3, 1))                        # n h w e
    gamma = emb_t @ params["gamma_w"].T + params["gamma_b"]         # n h w c
    beta = emb_t @ params["beta_w"].T + params["beta_b"]
    gamma = jnp.transpose(gamma, (0, 3, 1, 2))
    beta = jnp.transpose(beta, (0, 3, 1, 2))
    return xn * (gamma + 1.0) + beta


def _make_params(key, c, e, with_gn_affine):
    ks = jax.random.split(key, 6)
    p = {
        "gamma_w": 0.2 * jax.random.normal(ks[0], (c, e), dtype=jnp.float32),
        "gamma_b": 0.1 * jax.random.normal(ks[1], (c,), dtype=jnp.float32),
        "beta_w": 0.2 * jax.random.normal(ks[2], (c, e), dtype=jnp.float32),
        "beta_b": 0.1 * jax.random.normal(ks[3], (c,), dtype=jnp.float32),
    }
    if with_gn_affine:
        p["gn_weight"] = 1.0 + 0.1 * jax.random.normal(ks[4], (c,), dtype=jnp.float32)
        p["gn_bias"] = 0.1 * jax.random.normal(ks[5], (c,), dtype=jnp.float32)
    return p


if __name__ == "__main__":
    key = jax.random.PRNGKey(0)
    k_a, k_b, k_c = jax.random.split(key, 3)
    EPS = 1e-5

    # --- Case A: small shape, single channel block, single HW tile ---------
    N, C, H, W, E, G = 2, 4, 16, 16, 8, 2
    ka1, ka2, ka3 = jax.random.split(k_a, 3)
    xA = jax.random.normal(ka1, (N, C, H, W), dtype=jnp.float32)
    embA = jax.random.normal(ka2, (N, E, H, W), dtype=jnp.float32)
    pA = _make_params(ka3, C, E, with_gn_affine=True)

    outA = jax.block_until_ready(
        adaptive_group_norm_spatial(xA, embA, pA, num_groups=G, eps=EPS))
    refA = reference_forward(xA, embA, pA, num_groups=G, eps=EPS)
    assert outA.shape == (N, C, H, W)
    assert jnp.allclose(outA, refA, atol=1e-3, rtol=1e-3), "case A mismatch"

    # --- Case B: channel-blocked grid + spatial padding (HW not mult of 128)
    # (affine=False matches how the Decoder instantiates AdaptiveGroupNormSpatial)
    N2, C2, H2, W2, E2, G2 = 2, 32, 16, 20, 8, 4
    kb1, kb2, kb3 = jax.random.split(k_b, 3)
    xB = jax.random.normal(kb1, (N2, C2, H2, W2), dtype=jnp.float32)
    embB = jax.random.normal(kb2, (N2, E2, H2, W2), dtype=jnp.float32)
    pB = _make_params(kb3, C2, E2, with_gn_affine=False)

    outB = jax.block_until_ready(
        adaptive_group_norm_spatial(xB, embB, pB, num_groups=G2, eps=EPS,
                                    channels_per_block=16))
    refB = reference_forward(xB, embB, pB, num_groups=G2, eps=EPS)
    assert outB.shape == (N2, C2, H2, W2)
    assert jnp.allclose(outB, refB, atol=1e-3, rtol=1e-3), "case B mismatch"

    # --- Case C: bf16 activations, multiple HW tiles (stats accumulation) --
    N3, C3, H3, W3, E3, G3 = 2, 32, 32, 32, 8, 4
    kc1, kc2, kc3 = jax.random.split(k_c, 3)
    xC = jax.random.normal(kc1, (N3, C3, H3, W3), dtype=jnp.float32).astype(jnp.bfloat16)
    embC = jax.random.normal(kc2, (N3, E3, H3, W3), dtype=jnp.float32).astype(jnp.bfloat16)
    pC = _make_params(kc3, C3, E3, with_gn_affine=False)

    outC = jax.block_until_ready(
        adaptive_group_norm_spatial(xC, embC, pC, num_groups=G3, eps=EPS,
                                    spatial_block=256))   # 4 HW tiles
    refC = reference_forward(xC.astype(jnp.float32), embC.astype(jnp.float32),
                             pC, num_groups=G3, eps=EPS)
    assert outC.shape == (N3, C3, H3, W3)
    assert jnp.allclose(outC.astype(jnp.float32), refC, atol=5e-2, rtol=5e-2), "case C mismatch"

    print("KERNEL_OK")
</pallas_src>

<mosaic_0001>
module attributes {stable_mosaic.version = 11 : i64} {
  func.func @_stats_kernel(%arg0: i32, %arg1: i32, %arg2: i32, %arg3: memref<1x4x256xf32, #tpu.memory_space<vmem>>, %arg4: memref<1x4x1xf32, #tpu.memory_space<vmem>>, %arg5: memref<1x4x1xf32, #tpu.memory_space<vmem>>) attributes {dimension_semantics = [#tpu.dimension_semantics<parallel>, #tpu.dimension_semantics<parallel>, #tpu.dimension_semantics<arbitrary>], iteration_bounds = array<i64: 2, 1, 1>, scalar_prefetch = 0 : i64, scratch_operands = 0 : i64, tpu.core_type = #tpu.core_type<tc>, window_params = [{transform_indices = @transform_0, window_bounds = array<i64: 1, 4, 256>}, {transform_indices = @transform_1, window_bounds = array<i64: 1, 4, 1>}, {transform_indices = @transform_2, window_bounds = array<i64: 1, 4, 1>}]} {
    %c0_i32 = arith.constant 0 : i32
    %0 = arith.cmpi eq, %arg2, %c0_i32 : i32
    %1 = arith.extui %0 : i1 to i32
    %c0_i32_0 = arith.constant 0 : i32
    %2 = arith.cmpi ne, %1, %c0_i32_0 : i32
    scf.if %2 {
      %cst_16 = arith.constant 0.000000e+00 : f32
      %18 = vector.broadcast %cst_16 : f32 to vector<1x4x1xf32>
      %c0_17 = arith.constant 0 : index
      %c0_18 = arith.constant 0 : index
      %c0_19 = arith.constant 0 : index
      %19 = vector.load %arg4[%c0_17, %c0_18, %c0_19] : memref<1x4x1xf32, #tpu.memory_space<vmem>>, vector<1x4x1xf32>
      tpu.vector_store %arg4[%c0_17, %c0_18, %c0_19], %18 {strides = array<i32>} : memref<1x4x1xf32, #tpu.memory_space<vmem>>, vector<1x4x1xf32>,
      %cst_20 = arith.constant 0.000000e+00 : f32
      %20 = vector.broadcast %cst_20 : f32 to vector<1x4x1xf32>
      %c0_21 = arith.constant 0 : index
      %c0_22 = arith.constant 0 : index
      %c0_23 = arith.constant 0 : index
      %21 = vector.load %arg5[%c0_21, %c0_22, %c0_23] : memref<1x4x1xf32, #tpu.memory_space<vmem>>, vector<1x4x1xf32>
      tpu.vector_store %arg5[%c0_21, %c0_22, %c0_23], %20 {strides = array<i32>} : memref<1x4x1xf32, #tpu.memory_space<vmem>>, vector<1x4x1xf32>,
    } else {
    }
    %c0 = arith.constant 0 : index
    %c0_1 = arith.constant 0 : index
    %c0_2 = arith.constant 0 : index
    %3 = vector.load %arg3[%c0, %c0_1, %c0_2] : memref<1x4x256xf32, #tpu.memory_space<vmem>>, vector<1x4x256xf32>
    %4 = vector.shape_cast %3 : vector<1x4x256xf32> to vector<4x256xf32>
    %c0_3 = arith.constant 0 : index
    %c0_4 = arith.constant 0 : index
    %c0_5 = arith.constant 0 : index
    %5 = vector.load %arg4[%c0_3, %c0_4, %c0_5] : memref<1x4x1xf32, #tpu.memory_space<vmem>>, vector<1x4x1xf32>
    %cst = arith.constant dense<0.000000e+00> : vector<4xf32>
    %6 = vector.multi_reduction <add>, %4, %cst [1] : vector<4x256xf32> to vector<4xf32>
    %7 = vector.shape_cast %6 : vector<4xf32> to vector<4x1xf32>
    %8 = vector.shape_cast %7 : vector<4x1xf32> to vector<1x4x1xf32>
    %9 = arith.addf %5, %8 : vector<1x4x1xf32>
    %c0_6 = arith.constant 0 : index
    %c0_7 = arith.constant 0 : index
    %c0_8 = arith.constant 0 : index
    %10 = vector.load %arg4[%c0_6, %c0_7, %c0_8] : memref<1x4x1xf32, #tpu.memory_space<vmem>>, vector<1x4x1xf32>
    tpu.vector_store %arg4[%c0_6, %c0_7, %c0_8], %9 {strides = array<i32>} : memref<1x4x1xf32, #tpu.memory_space<vmem>>, vector<1x4x1xf32>,
    %c0_9 = arith.constant 0 : index
    %c0_10 = arith.constant 0 : index
    %c0_11 = arith.constant 0 : index
    %11 = vector.load %arg5[%c0_9, %c0_10, %c0_11] : memref<1x4x1xf32, #tpu.memory_space<vmem>>, vector<1x4x1xf32>
    %12 = arith.mulf %4, %4 : vector<4x256xf32>
    %cst_12 = arith.constant dense<0.000000e+00> : vector<4xf32>
    %13 = vector.multi_reduction <add>, %12, %cst_12 [1] : vector<4x256xf32> to vector<4xf32>
    %14 = vector.shape_cast %13 : vector<4xf32> to vector<4x1xf32>
    %15 = vector.shape_cast %14 : vector<4x1xf32> to vector<1x4x1xf32>
    %16 = arith.addf %11, %15 : vector<1x4x1xf32>
    %c0_13 = arith.constant 0 : index
    %c0_14 = arith.constant 0 : index
    %c0_15 = arith.constant 0 : index
    %17 = vector.load %arg5[%c0_13, %c0_14, %c0_15] : memref<1x4x1xf32, #tpu.memory_space<vmem>>, vector<1x4x1xf32>
    tpu.vector_store %arg5[%c0_13, %c0_14, %c0_15], %16 {strides = array<i32>} : memref<1x4x1xf32, #tpu.memory_space<vmem>>, vector<1x4x1xf32>,
    return
  }
  func.func @transform_0(%arg0: i32, %arg1: i32, %arg2: i32) -> (i32, i32, i32) {
    %c0_i32 = arith.constant 0 : i32
    return %arg0, %arg1, %arg2 : i32, i32, i32
  }
  func.func @transform_1(%arg0: i32, %arg1: i32, %arg2: i32) -> (i32, i32, i32) {
    %c0_i32 = arith.constant 0 : i32
    %c0_i32_0 = arith.constant 0 : i32
    return %arg0, %arg1, %c0_i32 : i32, i32, i32
  }
  func.func @transform_2(%arg0: i32, %arg1: i32, %arg2: i32) -> (i32, i32, i32) {
    %c0_i32 = arith.constant 0 : i32
    %c0_i32_0 = arith.constant 0 : i32
    return %arg0, %arg1, %c0_i32 : i32, i32, i32
  }
}

</mosaic_0001>

<llo_original>
// kernel: tpu_custom_call.1
$region0: #{tpu_custom_call.1}
  #allocation0 [shape = 'u32[]', space=smem, size = 0x4, offset = 0x4, fixed_abs, tag = 'smem constant byte address 0x4 - core index']
  #allocation1 [shape = 'u32[144,128]{1,0:T(1,128)}', space=vmem, size = 0x12000, scoped, tag = 'internal scratch']
  %s0 = inlined_call_operand.hbm [shape: f32[2,4,256], index: 0, kind: input, shape index: {}]
  %s1 = inlined_call_operand.vmem [shape: f32[2,4,1], index: 1, kind: output, shape index: {0}]
  %s2 = inlined_call_operand.vmem [shape: f32[2,4,1], index: 2, kind: output, shape index: {1}]
  %3 = xla_tuple %s1, %s2
  %s4 = sld [smem:[#allocation0]]
  $region53: #{tpu_custom_call.1} parent=0
    _
  %s6 = ssub.s32 1, %s4
  %s7 = scalar_select 0, %s6, %s4
  $region1: #{tpu_custom_call.1} parent=0
    #allocation2 [shape = 'u8[8192]{0}', space=vmem, size = 0x2000, scoped, tag = 'input window, operand 0']
    #allocation3 [shape = 's32[2]{0}', space=sflag, size = 0x8, scoped, tag = 'scoped memory for tpu_custom_call.1']
    %8 = vsyncpa [#allocation3], 0
    %s9 = scalar_lea.sflag [#allocation3], 1
    %10 = vsyncpa %s9, 0
    loop: start=0, step=1, limit=4
    $region2: #{tpu_custom_call.1} parent=1 // loop_pre_header
      _
    $region3: #{tpu_custom_call.1} parent=1 // loop_header
      %s12 = sphi 0, %s16
      %p13 = scmp.ge.s32.totalorder %s12, 4
      %s19 = sphi 0, %s38
      %s20 = sphi 0, %s34
      %s21 = sphi 0, %s30
      %s22 = sphi 0, %s19
      %s23 = sphi 0, %s20
      %s24 = sphi 0, %s21
      %s25 = sphi 0, %s22
      %s26 = sphi 0, %s23
      %s27 = sphi 0, %s24
      %s45 = sphi 0, %s47
      %s48 = sphi 0, %s45
      %s49 = sphi 0, %s48
      %s65 = sphi 0, %s49
      %s73 = sphi 0, %s75
      %s76 = sphi 0, %s73
      %s77 = sphi 0, %s76
      %s93 = sphi 0, %s77
      %s101 = sphi 0, %s103
      %s104 = sphi 0, %s101
      %s105 = sphi 0, %s104
      %s121 = sphi 0, %s105
    $region4: #{tpu_custom_call.1} parent=1 // loop_header_branch
      %15 = sbr.rel (%p13) target = $region8
    $region5: #{tpu_custom_call.1} parent=1 // loop_body
      %s17 = ssub.s32 %s12, 1
      %s18 = ssub.s32 %s12, 2
      %s28 = sadd.s32 1, %s21
      %p29 = scmp.ge.s32.totalorder %s28, 1
      %s30 = scalar_select %p29, 0, %s28
      %s31 = sadd.s32 1, %s20
      %s32 = scalar_select %p29, %s31, %s20
      %p33 = scmp.ge.s32.totalorder %s32, 1
      %s34 = scalar_select %p33, 0, %s32
      %s35 = sadd.s32 1, %s19
      %s36 = scalar_select %p33, %s35, %s19
      %p37 = scmp.ge.s32.totalorder %s36, 2
      %s38 = scalar_select %p37, 0, %s36
      %s39 = ssub.s32 %s19, %s38
      %s40 = ssub.s32 %s20, %s34
      %s41 = sor.u32 %s39, %s40
      %s42 = ssub.s32 %s21, %s30
      %s43 = sor.u32 %s41, %s42
      %p44 = scmp.eq.s32.totalorder %s43, 0
      %s46 = sadd.s32 %s45, 1
      %s47 = scalar_select %p44, %s45, %s46
      %p50 = pneg %p44
      %p51 = scmp.eq.s32.totalorder %s12, 1
      %p52 = por %p50, %p51
      %p53 = scmp.ne.s32.totalorder %s45, %s48
      %p54 = scmp.eq.s32.totalorder %s12, 0
      %p55 = por %p53, %p54
      %p56 = scmp.ne.s32.totalorder %s45, %s48
      %p57 = scmp.eq.s32.totalorder %s17, 1
      %p58 = por %p56, %p57
      %p59 = scmp.ne.s32.totalorder %s48, %s49
      %p60 = scmp.eq.s32.totalorder %s17, 0
      %p61 = por %p59, %p60
      %p62 = scmp.ne.s32.totalorder %s48, %s49
      %p63 = scmp.eq.s32.totalorder %s18, 1
      %p64 = por %p62, %p63
      %p66 = scmp.ne.s32.totalorder %s49, %s65
      %p67 = scmp.eq.s32.totalorder %s18, 0
      %p68 = por %p66, %p67
      %s69 = ssub.s32 %s19, %s38
      %s70 = ssub.s32 %s20, %s34
      %s71 = sor.u32 %s69, %s70
      %p72 = scmp.eq.s32.totalorder %s71, 0
      %s74 = sadd.s32 %s73, 1
      %s75 = scalar_select %p72, %s73, %s74
      %p78 = pneg %p72
      %p79 = scmp.eq.s32.totalorder %s12, 1
      %p80 = por %p78, %p79
      %p81 = scmp.ne.s32.totalorder %s73, %s76
      %p82 = scmp.eq.s32.totalorder %s12, 0
      %p83 = por %p81, %p82
      %p84 = scmp.ne.s32.totalorder %s73, %s76
      %p85 = scmp.eq.s32.totalorder %s17, 1
      %p86 = por %p84, %p85
      %p87 = scmp.ne.s32.totalorder %s76, %s77
      %p88 = scmp.eq.s32.totalorder %s17, 0
      %p89 = por %p87, %p88
      %p90 = scmp.ne.s32.totalorder %s76, %s77
      %p91 = scmp.eq.s32.totalorder %s18, 1
      %p92 = por %p90, %p91
      %p94 = scmp.ne.s32.totalorder %s77, %s93
      %p95 = scmp.eq.s32.totalorder %s18, 0
      %p96 = por %p94, %p95
      %s97 = ssub.s32 %s19, %s38
      %s98 = ssub.s32 %s20, %s34
      %s99 = sor.u32 %s97, %s98
      %p100 = scmp.eq.s32.totalorder %s99, 0
      %s102 = sadd.s32 %s101, 1
      %s103 = scalar_select %p100, %s101, %s102
      %p106 = pneg %p100
      %p107 = scmp.eq.s32.totalorder %s12, 1
      %p108 = por %p106, %p107
      %p109 = scmp.ne.s32.totalorder %s101, %s104
      %p110 = scmp.eq.s32.totalorder %s12, 0
      %p111 = por %p109, %p110
      %p112 = scmp.ne.s32.totalorder %s101, %s104
      %p113 = scmp.eq.s32.totalorder %s17, 1
      %p114 = por %p112, %p113
      %p115 = scmp.ne.s32.totalorder %s104, %s105
      %p116 = scmp.eq.s32.totalorder %s17, 0
      %p117 = por %p115, %p116
      %p118 = scmp.ne.s32.totalorder %s104, %s105
      %p119 = scmp.eq.s32.totalorder %s18, 1
      %p120 = por %p118, %p119
      %p122 = scmp.ne.s32.totalorder %s105, %s121
      %p123 = scmp.eq.s32.totalorder %s18, 0
      %p124 = por %p122, %p123
      %p125 = scmp.le.s32.totalorder 1, %s12
      %p126 = scmp.lt.s32.totalorder %s12, 3
      %p127 = pnand %p125, %p126
      %p128 = pneg %p127
      // Predicated region
      $region9: #{tpu_custom_call.1} parent=5 // pred_check
        _
      $region10: #{tpu_custom_call.1} parent=5 // pred_check_branch
        %130 = sbr.rel (%p127) target = $region12
      $region11: #{tpu_custom_call.1} parent=5 // pred_region
        %s131 = ssub.s32 %s12, 1
      $region12: #{tpu_custom_call.1} parent=5 // pred_fallthru
        _
      %p132 = scmp.lt.s32.totalorder %s12, 2
      // Predicated region
      $region13: #{tpu_custom_call.1} parent=5 // pred_check
        %p133 = pneg %p132
      $region14: #{tpu_custom_call.1} parent=5 // pred_check_branch
        %135 = sbr.rel (%p133) target = $region16
      $region15: #{tpu_custom_call.1} parent=5 // pred_region
        // Predicated region
        $region17: #{tpu_custom_call.1} parent=15 // pred_check
          %p136 = pneg %p55
        $region18: #{tpu_custom_call.1} parent=15 // pred_check_branch
          %138 = sbr.rel (%p136) target = $region20
        $region19: #{tpu_custom_call.1} parent=15 // pred_region
          %s139 = sand.u32 %s45, 1
          %s140 = scalar_lea.sflag [#allocation3], %s139
          %s141 = sand.u32 %s45, 1
          %s142 = smul.addr %s141, 8
          %s143 = scalar_lea.vmem [#allocation2], %s142
          %s144 = smul.u32 2, %s21
          %s146 = ssub.s32 128, 128
          %147 = vsyncadd %s140, %s146
          %s148 = smul.addr %s20, 2
          %s149 = sadd.s32 %s144, %s148
          %s150 = smul.addr %s19, 2
          %s151 = sadd.s32 %s149, %s150
          %s152 = smul.addr %s151, 64
          %s153 = scalar_lea.hbm %s0, %s152
          %s155 = sshll.u32 %s143, 4
          %s156 = int_to_ptr.vmem [resolvable:$true] %s155
          %158 = dma.hbm_to_vmem [thread:$0]  %s153, 128, %s156, %s140
        $region20: #{tpu_custom_call.1} parent=15 // pred_fallthru
          _
      $region16: #{tpu_custom_call.1} parent=5 // pred_fallthru
        _
      %p159 = scmp.le.s32.totalorder 1, %s12
      %p160 = scmp.lt.s32.totalorder %s12, 3
      %p161 = pnand %p159, %p160
      %p162 = pneg %p161
      // Predicated region
      $region21: #{tpu_custom_call.1} parent=5 // pred_check
        _
      $region22: #{tpu_custom_call.1} parent=5 // pred_check_branch
        %164 = sbr.rel (%p161) target = $region24
      $region23: #{tpu_custom_call.1} parent=5 // pred_region
        %s165 = ssub.s32 %s12, 1
        %s166 = sand.u32 %s48, 1
        %s167 = scalar_lea.sflag [#allocation3], %s166
        %s168 = sand.u32 %s48, 1
        %s169 = smul.addr %s168, 8
        %s170 = scalar_lea.vmem [#allocation2], %s169
        // Predicated region
        $region25: #{tpu_custom_call.1} parent=23 // pred_check
          %p171 = pneg %p61
        $region26: #{tpu_custom_call.1} parent=23 // pred_check_branch
          %173 = sbr.rel (%p171) target = $region28
        $region27: #{tpu_custom_call.1} parent=23 // pred_region
          %174 = dma.done %s167, 128
        $region28: #{tpu_custom_call.1} parent=23 // pred_fallthru
          _
        %s175 = sand.u32 %s48, 1
        %s176 = scalar_lea.sflag [#allocation3], %s175
        %s177 = sand.u32 %s48, 1
        %s178 = smul.addr %s177, 8
        %s179 = scalar_lea.vmem [#allocation2], %s178
        %p180 = pneg %p61
        %p181 = pneg %p58
        %p182 = pneg %p89
        %p183 = pneg %p86
        %p184 = scmp.lt.s32.totalorder %s22, 1
        %s185 = scalar_select %p184, %s22, 1
        %p186 = scmp.lt.s32.totalorder %s23, 0
        %s187 = scalar_select %p186, %s23, 0
        %s188 = sadd.s32 %s187, %s185
        %s189 = smul.addr %s188, 4
        %s190 = scalar_lea.vmem %s1, %s189
        %p191 = pneg %p117
        %p192 = pneg %p114
        %p193 = scmp.lt.s32.totalorder %s22, 1
        %s194 = scalar_select %p193, %s22, 1
        %p195 = scmp.lt.s32.totalorder %s23, 0
        %s196 = scalar_select %p195, %s23, 0
        %s197 = sadd.s32 %s196, %s194
        %s198 = smul.addr %s197, 4
        %s199 = scalar_lea.vmem %s2, %s198
        %s200 = smul.u32 2, %s24
        %p201 = scmp.lt.s32.totalorder %s22, 1
        %s202 = scalar_select %p201, %s22, 1
        %p203 = scmp.lt.s32.totalorder %s23, 0
        %s204 = scalar_select %p203, %s23, 0
        %s205 = sadd.s32 %s204, %s202
        %s206 = smul.addr %s205, 4
        %s207 = scalar_lea.vmem %s1, %s206
        %p208 = scmp.lt.s32.totalorder %s22, 1
        %s209 = scalar_select %p208, %s22, 1
        %p210 = scmp.lt.s32.totalorder %s23, 0
        %s211 = scalar_select %p210, %s23, 0
        %s212 = sadd.s32 %s211, %s209
        %s213 = smul.addr %s212, 4
        %s214 = scalar_lea.vmem %s2, %s213
        %p215 = scmp.eq.s32.totalorder %s24, 0
        // Predicated region
        $region29: #{tpu_custom_call.1} parent=23 // pred_check
          %p216 = pneg %p215
        $region30: #{tpu_custom_call.1} parent=23 // pred_check_branch
          %218 = sbr.rel (%p216) target = $region32
        $region31: #{tpu_custom_call.1} parent=23 // pred_region
          %vm219 = vcmask 3072
          %220 = vst.msk [vmem:[%s207] sm:$0xf] %vm219, 0.0
          %221 = vst.msk [vmem:[%s214] sm:$0xf] %vm219, 0.0
        $region32: #{tpu_custom_call.1} parent=23 // pred_fallthru
          _
        %v222 = vld [vmem:[%s170] sm:$0xff]
        %v223 = vld [vmem:[%s207] sm:$0xf]
        %v225 = vcombine.high %v222, %v222
        %vm227 = vcmask 1043456
        %v228 = vsel %vm227, %v222, 0.0
        %v229 = vsel %vm227, %v225, 0.0
        %v230 = vadd.f32 %v228, %v229
        %231 = vadd.xlane.f32.xlu0 %v230
        %v232 = vpop.xlane.xlu0 %231
        %v233 = vadd.f32 %v223, %v232
        %vm234 = vcmask 3072
        %235 = vst.msk [vmem:[%s207] sm:$0xf] %vm234, %v233
        %v236 = vld [vmem:[%s214] sm:$0xf]
        %v237 = vmul.f32 %v222, %v222
        %v239 = vcombine.high %v237, %v237
        %v241 = vsel %vm227, %v237, 0.0
        %v242 = vsel %vm227, %v239, 0.0
        %v243 = vadd.f32 %v241, %v242
        %244 = vadd.xlane.f32.xlu0 %v243
        %v245 = vpop.xlane.xlu0 %244
        %v246 = vadd.f32 %v236, %v245
        %247 = vst.msk [vmem:[%s214] sm:$0xf] %vm234, %v246
        %p248 = scmp.lt.s32.totalorder %s22, 1
        %s249 = scalar_select %p248, %s22, 1
        %p250 = scmp.lt.s32.totalorder %s23, 0
        %s251 = scalar_select %p250, %s23, 0
        %s252 = sadd.s32 %s251, %s249
        %s253 = smul.addr %s252, 4
        %s254 = scalar_lea.vmem %s1, %s253
        %p255 = scmp.lt.s32.totalorder %s22, 1
        %s256 = scalar_select %p255, %s22, 1
        %p257 = scmp.lt.s32.totalorder %s23, 0
        %s258 = scalar_select %p257, %s23, 0
        %s259 = sadd.s32 %s258, %s256
        %s260 = smul.addr %s259, 4
        %s261 = scalar_lea.vmem %s2, %s260
        // Predicated region
        $region33: #{tpu_custom_call.1} parent=23 // pred_check
          %p262 = pneg %p86
        $region34: #{tpu_custom_call.1} parent=23 // pred_check_branch
          %264 = sbr.rel (%p262) target = $region36
        $region35: #{tpu_custom_call.1} parent=23 // pred_region
          _
        $region36: #{tpu_custom_call.1} parent=23 // pred_fallthru
          _
        // Predicated region
        $region37: #{tpu_custom_call.1} parent=23 // pred_check
          %p265 = pneg %p114
        $region38: #{tpu_custom_call.1} parent=23 // pred_check_branch
          %267 = sbr.rel (%p265) target = $region40
        $region39: #{tpu_custom_call.1} parent=23 // pred_region
          _
        $region40: #{tpu_custom_call.1} parent=23 // pred_fallthru
          _
      $region24: #{tpu_custom_call.1} parent=5 // pred_fallthru
        _
      %p268 = scmp.le.s32.totalorder 2, %s12
      // Predicated region
      $region41: #{tpu_custom_call.1} parent=5 // pred_check
        %p269 = pneg %p268
      $region42: #{tpu_custom_call.1} parent=5 // pred_check_branch
        %271 = sbr.rel (%p269) target = $region44
      $region43: #{tpu_custom_call.1} parent=5 // pred_region
        %s272 = ssub.s32 %s12, 2
        // Predicated region
        $region45: #{tpu_custom_call.1} parent=43 // pred_check
          %p273 = pneg %p92
        $region46: #{tpu_custom_call.1} parent=43 // pred_check_branch
          %275 = sbr.rel (%p273) target = $region48
        $region47: #{tpu_custom_call.1} parent=43 // pred_region
          %p276 = scmp.lt.s32.totalorder %s25, 1
          %s277 = scalar_select %p276, %s25, 1
          %p278 = scmp.lt.s32.totalorder %s26, 0
          %s279 = scalar_select %p278, %s26, 0
          %s280 = sadd.s32 %s279, %s277
          %s281 = smul.addr %s280, 4
          %s282 = scalar_lea.vmem %s1, %s281
        $region48: #{tpu_custom_call.1} parent=43 // pred_fallthru
          _
        // Predicated region
        $region49: #{tpu_custom_call.1} parent=43 // pred_check
          %p283 = pneg %p120
        $region50: #{tpu_custom_call.1} parent=43 // pred_check_branch
          %285 = sbr.rel (%p283) target = $region52
        $region51: #{tpu_custom_call.1} parent=43 // pred_region
          %p286 = scmp.lt.s32.totalorder %s25, 1
          %s287 = scalar_select %p286, %s25, 1
          %p288 = scmp.lt.s32.totalorder %s26, 0
          %s289 = scalar_select %p288, %s26, 0
          %s290 = sadd.s32 %s289, %s287
          %s291 = smul.addr %s290, 4
          %s292 = scalar_lea.vmem %s2, %s291
        $region52: #{tpu_custom_call.1} parent=43 // pred_fallthru
          _
      $region44: #{tpu_custom_call.1} parent=5 // pred_fallthru
        _
    $region6: #{tpu_custom_call.1} parent=1 // loop_footer
      %s16 = sadd.s32 1, %s12
    $region7: #{tpu_custom_call.1} parent=1 // loop_footer_branch
      %11 = sbr.rel target = $region3
    $region8: #{tpu_custom_call.1} parent=1 // loop_exit
      _
    %293 = vsyncpa [#allocation3], 1
    %s294 = scalar_lea.sflag [#allocation3], 1
    %295 = vsyncpa %s294, 1

</llo_original>
